<compile_context>
chip_gen: v5e
topology: v5e:2x2
jax: 0.10.0
libtpu: 0.0.40
codegen_flags: <defaults>
</compile_context>

<pallas_src>
import jax
import jax.numpy as jnp
from jax.experimental import pallas as pl
from jax.experimental.pallas import tpu as pltpu

VOCABS = (13, 32, 8, 25, 7)      # month, day, weekday, hour, min (+1 pad row each)
OFFSETS = (0, 13, 45, 53, 78)    # cumulative offsets into the concatenated table
TOTAL_VOCAB = sum(VOCABS)        # 85
PADDED_VOCAB = 128               # table rows padded to a full lane width (MXU K)
NUM_FIELDS = 5
MAX_TILE = 2048


def _round_up(x, m):
    return ((x + m - 1) // m) * m


def temporal_emb_kernel(idx_ref, table_ref, out_ref):
    """idx_ref:   (TILE, 5) int32 raw field indices (no pre-shifting).
    table_ref: (128, E) f32 concatenated table, pre-scaled by 1/5.
    out_ref:   (TILE, E) f32 mean embedding per row."""
    idx = idx_ref[...]                                      # (TILE, 5)
    tile = idx.shape[0]
    vocab = table_ref.shape[0]                              # 128 (padded K)
    vocab_iota = jax.lax.broadcasted_iota(jnp.int32, (tile, vocab), 1)

    # Field offsets are folded into the compares. The 5 offset ranges are
    # disjoint, so the one-hot lanes never collide and an OR chain + single
    # cast builds the exact multi-hot matrix.
    hits = vocab_iota == idx[:, 0:1]                        # OFFSETS[0] == 0
    for f in range(1, NUM_FIELDS):                          # static unroll (5)
        hits = jnp.logical_or(hits, vocab_iota == (idx[:, f:f + 1] + OFFSETS[f]))
    multihot = hits.astype(jnp.float32)                     # (TILE, 128)

    # One MXU matmul gathers + sums the 5 embeddings; the 1/5 scale is already
    # baked into the table, so no per-tile VPU multiply is needed.
    # TODO(synk): on v5e a bf16 table + bf16 multihot keeps the MXU single-pass
    # (f32 x f32 is multi-pass there); kept f32 to match the f32 reference.
    out_ref[...] = jnp.dot(
        multihot, table_ref[...], preferred_element_type=jnp.float32
    ).astype(out_ref.dtype)


def _choose_tile(n, e):
    """Row tile: as large as VMEM comfortably allows (<= 2048), a multiple of 8,
    preferring an exact divisor of n (n_pad == n -> no row pad, free reshape)
    and leaving >= 2 grid steps so both v7x TensorCores are used."""
    per_buf_budget = 4 * 1024 * 1024                        # v5e 16 MiB scoped-safe
    cap = max(8, min(MAX_TILE, (per_buf_budget // (e * 4)) // 8 * 8))
    cap = min(cap, max(8, _round_up(n, 8)))                 # never over-pad tiny inputs
    if n >= 16:
        cap = min(cap, max(8, (n // 2) // 8 * 8))           # keep grid >= 2 steps
    if n % 8 == 0:
        t = cap
        while t >= 8:
            if n % t == 0:
                return t                                    # exact divisor: no row pad
            t -= 8
    return cap


def temporal_embedding(x, prepared_table, *, tile=None):
    """x: (B, S, 5) int raw temporal indices.
    prepared_table: (128, E) f32 from prepare_table().
    Returns (B, S, E) f32 — mean of the 5 per-field embeddings."""
    B, S, F = x.shape
    assert F == NUM_FIELDS
    assert prepared_table.shape[0] == PADDED_VOCAB
    e = prepared_table.shape[1]

    n = B * S
    if tile is None:
        tile = _choose_tile(n, e)
    n_pad = _round_up(n, tile)

    idx_flat = x.astype(jnp.int32).reshape(n, NUM_FIELDS)
    if n_pad != n:
        # pad rows with index 0 -> every field hits its zeroed padding row
        idx_flat = jnp.pad(idx_flat, ((0, n_pad - n), (0, 0)))

    out_flat = pl.pallas_call(
        temporal_emb_kernel,
        out_shape=jax.ShapeDtypeStruct((n_pad, e), jnp.float32),
        grid_spec=pltpu.PrefetchScalarGridSpec(
            num_scalar_prefetch=0,
            grid=(n_pad // tile,),
            in_specs=[
                pl.BlockSpec((tile, NUM_FIELDS), lambda i: (i, 0)),
                # Constant index map: the (128, E) table is fetched once and
                # stays resident across grid steps. (At E=32 the redundant
                # second pipeline buffer is 16 KiB — negligible; for very
                # large E consider pipeline_mode=pl.Buffered(1).)
                pl.BlockSpec((PADDED_VOCAB, e), lambda i: (0, 0)),
            ],
            out_specs=pl.BlockSpec((tile, e), lambda i: (i, 0)),
        ),
        compiler_params=pltpu.CompilerParams(
            dimension_semantics=("parallel",)),
    )(idx_flat, prepared_table)

    # TODO(synk): emit bf16 output if downstream tolerates it (halves HBM
    # writeback on a write-bound kernel; changes numerics vs f32 reference).
    if n_pad != n:
        out_flat = out_flat[:n]                             # row slice only; lane dim untouched
    return out_flat.reshape(B, S, e)


def make_tables(embed_size, key):
    """Deterministic init mimicking the 5 nn.Embedding layers: N(0,1) weights,
    padding_idx=0 row zeroed per table. Returns raw concatenated (85, E)."""
    keys = jax.random.split(key, NUM_FIELDS)
    parts = []
    for k, v in zip(keys, VOCABS):
        w = jax.random.normal(k, (v, embed_size), dtype=jnp.float32)
        w = w.at[0].set(0.0)                                # padding_idx = 0
        parts.append(w)
    return jnp.concatenate(parts, axis=0)                   # (85, E)


def prepare_table(table):
    """One-time init transform: fold the 1/5 mean scale into the weights and
    zero-pad ONLY the row (K) dim to 128. The feature dim stays at the true
    embed_size so the kernel output (and HBM writeback) is exactly (rows, E)."""
    v, e = table.shape
    assert v == TOTAL_VOCAB
    t = table.astype(jnp.float32) * (1.0 / NUM_FIELDS)
    return jnp.pad(t, ((0, PADDED_VOCAB - v), (0, 0)))      # (128, E)


def reference(x, raw_table):
    """Pure-JAX reference (gather + mean) on the raw (85, E) table."""
    offsets = jnp.asarray(OFFSETS, dtype=jnp.int32)
    idx = x.astype(jnp.int32) + offsets                     # (B, S, 5)
    embs = raw_table[idx]                                   # (B, S, 5, E)
    return embs.mean(axis=2)


if __name__ == "__main__":
    key = jax.random.PRNGKey(0)
    k_tab, k_m, k_d, k_w, k_h, k_mi = jax.random.split(key, 6)

    B, S, E = 2, 8, 32
    raw_table = make_tables(E, k_tab)          # nn.Embedding-equivalent weights
    table = prepare_table(raw_table)           # scaled + K-padded, done once

    month = jax.random.randint(k_m, (B, S), 0, 13)
    day = jax.random.randint(k_d, (B, S), 0, 32)
    weekday = jax.random.randint(k_w, (B, S), 0, 8)
    hour = jax.random.randint(k_h, (B, S), 0, 25)
    minute = jax.random.randint(k_mi, (B, S), 0, 7)
    x = jnp.stack([month, day, weekday, hour, minute], axis=2).astype(jnp.int32)

    out = temporal_embedding(x, table)
    out = jax.block_until_ready(out)

    ref = reference(x, raw_table)
    assert out.shape == (B, S, E), out.shape
    assert jnp.allclose(out, ref, atol=1e-5, rtol=1e-5), "mismatch vs reference"

    print("KERNEL_OK")
</pallas_src>

<mosaic_0001>
module attributes {stable_mosaic.version = 11 : i64} {
  func.func @temporal_emb_kernel(%arg0: i32, %arg1: memref<8x5xi32, #tpu.memory_space<vmem>>, %arg2: memref<128x32xf32, #tpu.memory_space<vmem>>, %arg3: memref<8x32xf32, #tpu.memory_space<vmem>>) attributes {dimension_semantics = [#tpu.dimension_semantics<parallel>], iteration_bounds = array<i64: 2>, scalar_prefetch = 0 : i64, scratch_operands = 0 : i64, tpu.core_type = #tpu.core_type<tc>, window_params = [{transform_indices = @transform_0, window_bounds = array<i64: 8, 5>}, {pipeline_mode = #tpu.pipeline_mode<synchronous>, transform_indices = @transform_1, window_bounds = array<i64: 128, 32>}, {transform_indices = @transform_2, window_bounds = array<i64: 8, 32>}]} {
    %c0 = arith.constant 0 : index
    %c0_0 = arith.constant 0 : index
    %0 = vector.load %arg1[%c0, %c0_0] : memref<8x5xi32, #tpu.memory_space<vmem>>, vector<8x5xi32>
    %1 = tpu.iota {dimensions = array<i32: 1>} : vector<8x128xi32>
    %2 = vector.extract_strided_slice %0 {offsets = [0, 0], sizes = [8, 1], strides = [1, 1]} : vector<8x5xi32> to vector<8x1xi32>
    %3 = vector.broadcast %2 : vector<8x1xi32> to vector<8x128xi32>
    %4 = arith.cmpi eq, %1, %3 : vector<8x128xi32>
    %5 = vector.extract_strided_slice %0 {offsets = [0, 1], sizes = [8, 1], strides = [1, 1]} : vector<8x5xi32> to vector<8x1xi32>
    %c13_i32 = arith.constant 13 : i32
    %6 = vector.broadcast %c13_i32 : i32 to vector<8x1xi32>
    %7 = arith.addi %5, %6 : vector<8x1xi32>
    %8 = vector.broadcast %7 : vector<8x1xi32> to vector<8x128xi32>
    %9 = arith.cmpi eq, %1, %8 : vector<8x128xi32>
    %10 = arith.ori %4, %9 : vector<8x128xi1>
    %11 = vector.extract_strided_slice %0 {offsets = [0, 2], sizes = [8, 1], strides = [1, 1]} : vector<8x5xi32> to vector<8x1xi32>
    %c45_i32 = arith.constant 45 : i32
    %12 = vector.broadcast %c45_i32 : i32 to vector<8x1xi32>
    %13 = arith.addi %11, %12 : vector<8x1xi32>
    %14 = vector.broadcast %13 : vector<8x1xi32> to vector<8x128xi32>
    %15 = arith.cmpi eq, %1, %14 : vector<8x128xi32>
    %16 = arith.ori %10, %15 : vector<8x128xi1>
    %17 = vector.extract_strided_slice %0 {offsets = [0, 3], sizes = [8, 1], strides = [1, 1]} : vector<8x5xi32> to vector<8x1xi32>
    %c53_i32 = arith.constant 53 : i32
    %18 = vector.broadcast %c53_i32 : i32 to vector<8x1xi32>
    %19 = arith.addi %17, %18 : vector<8x1xi32>
    %20 = vector.broadcast %19 : vector<8x1xi32> to vector<8x128xi32>
    %21 = arith.cmpi eq, %1, %20 : vector<8x128xi32>
    %22 = arith.ori %16, %21 : vector<8x128xi1>
    %23 = vector.extract_strided_slice %0 {offsets = [0, 4], sizes = [8, 1], strides = [1, 1]} : vector<8x5xi32> to vector<8x1xi32>
    %c78_i32 = arith.constant 78 : i32
    %24 = vector.broadcast %c78_i32 : i32 to vector<8x1xi32>
    %25 = arith.addi %23, %24 : vector<8x1xi32>
    %26 = vector.broadcast %25 : vector<8x1xi32> to vector<8x128xi32>
    %27 = arith.cmpi eq, %1, %26 : vector<8x128xi32>
    %28 = arith.ori %22, %27 : vector<8x128xi1>
    %29 = arith.extui %28 : vector<8x128xi1> to vector<8x128xi32>
    %30 = arith.sitofp %29 : vector<8x128xi32> to vector<8x128xf32>
    %c0_1 = arith.constant 0 : index
    %c0_2 = arith.constant 0 : index
    %31 = vector.load %arg2[%c0_1, %c0_2] : memref<128x32xf32, #tpu.memory_space<vmem>>, vector<128x32xf32>
    %cst = arith.constant dense<0.000000e+00> : vector<8x32xf32>
    %32 = tpu.matmul %30, %31, %cst {dimension_numbers = #tpu.dot_dimension_numbers<[1], [0], [0], [1], [0, 0, 1, 1], [], []>} : vector<8x128xf32>, vector<128x32xf32>, vector<8x32xf32> -> vector<8x32xf32>
    %c0_3 = arith.constant 0 : index
    %c0_4 = arith.constant 0 : index
    %33 = vector.load %arg3[%c0_3, %c0_4] : memref<8x32xf32, #tpu.memory_space<vmem>>, vector<8x32xf32>
    tpu.vector_store %arg3[%c0_3, %c0_4], %32 {strides = array<i32>} : memref<8x32xf32, #tpu.memory_space<vmem>>, vector<8x32xf32>,
    return
  }
  func.func @transform_0(%arg0: i32) -> (i32, i32) {
    %c0_i32 = arith.constant 0 : i32
    %c0_i32_0 = arith.constant 0 : i32
    return %arg0, %c0_i32 : i32, i32
  }
  func.func @transform_1(%arg0: i32) -> (i32, i32) {
    %c0_i32 = arith.constant 0 : i32
    %c0_i32_0 = arith.constant 0 : i32
    %c0_i32_1 = arith.constant 0 : i32
    return %c0_i32, %c0_i32_0 : i32, i32
  }
  func.func @transform_2(%arg0: i32) -> (i32, i32) {
    %c0_i32 = arith.constant 0 : i32
    %c0_i32_0 = arith.constant 0 : i32
    return %arg0, %c0_i32 : i32, i32
  }
}

</mosaic_0001>

<llo_original>
// kernel: tpu_custom_call.1
$region0: #{tpu_custom_call.1}
  #allocation0 [shape = 'u32[]', space=smem, size = 0x4, offset = 0x4, fixed_abs, tag = 'smem constant byte address 0x4 - core index']
  #allocation1 [shape = 'u32[72,128]{1,0:T(1,128)}', space=vmem, size = 0x9000, scoped, tag = 'internal scratch']
  %s0 = inlined_call_operand.vmem [shape: s32[16,5], index: 0, kind: input, shape index: {}]
  %s1 = inlined_call_operand.vmem [shape: f32[128,32], index: 1, kind: input, shape index: {}]
  %s2 = inlined_call_operand.hbm [shape: f32[16,32], index: 2, kind: output, shape index: {}]
  %s3 = sld [smem:[#allocation0]]
  $region41: #{tpu_custom_call.1} parent=0
    _
  %s5 = ssub.s32 1, %s3
  %s6 = scalar_select 0, %s5, %s3
  $region1: #{tpu_custom_call.1} parent=0
    #allocation2 [shape = 'u8[8192]{0}', space=vmem, size = 0x2000, scoped, tag = 'output window, operand 0']
    #allocation3 [shape = 's32[2]{0}', space=sflag, size = 0x8, scoped, tag = 'scoped memory for tpu_custom_call.1']
    %7 = vsyncpa [#allocation3], 0
    %s8 = scalar_lea.sflag [#allocation3], 1
    %9 = vsyncpa %s8, 0
    loop: start=0, step=1, limit=4
    $region2: #{tpu_custom_call.1} parent=1 // loop_pre_header
      _
    $region3: #{tpu_custom_call.1} parent=1 // loop_header
      %s11 = sphi 0, %s15
      %p12 = scmp.ge.s32.totalorder %s11, 4
      %s21 = sphi 0, %s23
      %s24 = sphi 0, %s21
      %s25 = sphi 0, %s24
      %s41 = sphi 0, %s25
      %s45 = sphi 0, %s45
      %s47 = sphi 0, %s45
      %s48 = sphi 0, %s47
      %s62 = sphi 0, %s48
      %s68 = sphi 0, %s70
      %s71 = sphi 0, %s68
      %s72 = sphi 0, %s71
      %s88 = sphi 0, %s72
    $region4: #{tpu_custom_call.1} parent=1 // loop_header_branch
      %14 = sbr.rel (%p12) target = $region8
    $region5: #{tpu_custom_call.1} parent=1 // loop_body
      %s16 = ssub.s32 %s11, 1
      %s17 = ssub.s32 %s11, 2
      %s18 = sadd.s32 %s11, 1
      %s19 = ssub.s32 %s11, %s18
      %p20 = scmp.eq.s32.totalorder %s19, 0
      %s22 = sadd.s32 %s21, 1
      %s23 = scalar_select %p20, %s21, %s22
      %p26 = pneg %p20
      %p27 = scmp.eq.s32.totalorder %s11, 1
      %p28 = por %p26, %p27
      %p29 = scmp.ne.s32.totalorder %s21, %s24
      %p30 = scmp.eq.s32.totalorder %s11, 0
      %p31 = por %p29, %p30
      %p32 = scmp.ne.s32.totalorder %s21, %s24
      %p33 = scmp.eq.s32.totalorder %s16, 1
      %p34 = por %p32, %p33
      %p35 = scmp.ne.s32.totalorder %s24, %s25
      %p36 = scmp.eq.s32.totalorder %s16, 0
      %p37 = por %p35, %p36
      %p38 = scmp.ne.s32.totalorder %s24, %s25
      %p39 = scmp.eq.s32.totalorder %s17, 1
      %p40 = por %p38, %p39
      %p42 = scmp.ne.s32.totalorder %s25, %s41
      %p43 = scmp.eq.s32.totalorder %s17, 0
      %p44 = por %p42, %p43
      %s46 = sadd.s32 %s45, 1
      %p49 = scmp.eq.s32.totalorder %s11, 1
      %p50 = scmp.ne.s32.totalorder %s45, %s47
      %p51 = scmp.eq.s32.totalorder %s11, 0
      %p52 = por %p50, %p51
      %p53 = scmp.ne.s32.totalorder %s45, %s47
      %p54 = scmp.eq.s32.totalorder %s16, 1
      %p55 = por %p53, %p54
      %p56 = scmp.ne.s32.totalorder %s47, %s48
      %p57 = scmp.eq.s32.totalorder %s16, 0
      %p58 = por %p56, %p57
      %p59 = scmp.ne.s32.totalorder %s47, %s48
      %p60 = scmp.eq.s32.totalorder %s17, 1
      %p61 = por %p59, %p60
      %p63 = scmp.ne.s32.totalorder %s48, %s62
      %p64 = scmp.eq.s32.totalorder %s17, 0
      %p65 = por %p63, %p64
      %s66 = ssub.s32 %s11, %s18
      %p67 = scmp.eq.s32.totalorder %s66, 0
      %s69 = sadd.s32 %s68, 1
      %s70 = scalar_select %p67, %s68, %s69
      %p73 = pneg %p67
      %p74 = scmp.eq.s32.totalorder %s11, 1
      %p75 = por %p73, %p74
      %p76 = scmp.ne.s32.totalorder %s68, %s71
      %p77 = scmp.eq.s32.totalorder %s11, 0
      %p78 = por %p76, %p77
      %p79 = scmp.ne.s32.totalorder %s68, %s71
      %p80 = scmp.eq.s32.totalorder %s16, 1
      %p81 = por %p79, %p80
      %p82 = scmp.ne.s32.totalorder %s71, %s72
      %p83 = scmp.eq.s32.totalorder %s16, 0
      %p84 = por %p82, %p83
      %p85 = scmp.ne.s32.totalorder %s71, %s72
      %p86 = scmp.eq.s32.totalorder %s17, 1
      %p87 = por %p85, %p86
      %p89 = scmp.ne.s32.totalorder %s72, %s88
      %p90 = scmp.eq.s32.totalorder %s17, 0
      %p91 = por %p89, %p90
      %p92 = scmp.le.s32.totalorder 1, %s11
      %p93 = scmp.lt.s32.totalorder %s11, 3
      %p94 = pnand %p92, %p93
      %p95 = pneg %p94
      // Predicated region
      $region9: #{tpu_custom_call.1} parent=5 // pred_check
        _
      $region10: #{tpu_custom_call.1} parent=5 // pred_check_branch
        %97 = sbr.rel (%p94) target = $region12
      $region11: #{tpu_custom_call.1} parent=5 // pred_region
        %s98 = ssub.s32 %s11, 1
        // Predicated region
        $region13: #{tpu_custom_call.1} parent=11 // pred_check
          %p99 = pneg %p58
        $region14: #{tpu_custom_call.1} parent=11 // pred_check_branch
          %101 = sbr.rel (%p99) target = $region16
        $region15: #{tpu_custom_call.1} parent=11 // pred_region
          _
        $region16: #{tpu_custom_call.1} parent=11 // pred_fallthru
          _
      $region12: #{tpu_custom_call.1} parent=5 // pred_fallthru
        _
      %p102 = scmp.lt.s32.totalorder %s11, 2
      // Predicated region
      $region17: #{tpu_custom_call.1} parent=5 // pred_check
        %p103 = pneg %p102
      $region18: #{tpu_custom_call.1} parent=5 // pred_check_branch
        %105 = sbr.rel (%p103) target = $region20
      $region19: #{tpu_custom_call.1} parent=5 // pred_region
        // Predicated region
        $region21: #{tpu_custom_call.1} parent=19 // pred_check
          %p106 = pneg %p31
        $region22: #{tpu_custom_call.1} parent=19 // pred_check_branch
          %108 = sbr.rel (%p106) target = $region24
        $region23: #{tpu_custom_call.1} parent=19 // pred_region
          %p109 = scmp.lt.s32.totalorder %s11, 1
          %s110 = scalar_select %p109, %s11, 1
          %s111 = smul.addr %s110, 8
          %s112 = scalar_lea.vmem %s0, %s111
        $region24: #{tpu_custom_call.1} parent=19 // pred_fallthru
          _
      $region20: #{tpu_custom_call.1} parent=5 // pred_fallthru
        _
      %p113 = scmp.le.s32.totalorder 1, %s11
      %p114 = scmp.lt.s32.totalorder %s11, 3
      %p115 = pnand %p113, %p114
      %p116 = pneg %p115
      // Predicated region
      $region25: #{tpu_custom_call.1} parent=5 // pred_check
        _
      $region26: #{tpu_custom_call.1} parent=5 // pred_check_branch
        %118 = sbr.rel (%p115) target = $region28
      $region27: #{tpu_custom_call.1} parent=5 // pred_region
        %s119 = ssub.s32 %s11, 1
        %p120 = scmp.lt.s32.totalorder %s16, 1
        %s121 = scalar_select %p120, %s16, 1
        %s122 = smul.addr %s121, 8
        %s123 = scalar_lea.vmem %s0, %s122
        %p124 = pneg %p37
        %p125 = pneg %p34
        %p126 = pneg %p58
        %p127 = pneg %p55
        %p128 = pneg %p84
        %p129 = pneg %p81
        %s130 = sand.u32 %s71, 1
        %s131 = scalar_lea.sflag [#allocation3], %s130
        %s132 = sand.u32 %s71, 1
        %s133 = smul.addr %s132, 8
        %s134 = scalar_lea.vmem [#allocation2], %s133
        %p135 = scmp.lt.s32.totalorder %s16, 1
        %s136 = scalar_select %p135, %s16, 1
        %s137 = smul.addr %s136, 8
        %s138 = scalar_lea.vmem %s0, %s137
        %v139 = vld [vmem:[%s138] sm:$0xff]
        %v140 = vlaneseq
        %v141 = vand.u32 %v140, 127
        %142 = vset.pattern.permute.xlu0 0
        %143 = vperm.xlu0 %142, %v139
        %v144 = vpop.permute.xlu0 %143
        %vm145 = vcmp.eq.s32.totalorder %v141, %v144
        %v146 = vadd.s32 %v139, 13
        %147 = vset.pattern.permute.xlu0 1
        %148 = vperm.xlu0 %147, %v146
        %v149 = vpop.permute.xlu0 %148
        %vm150 = vcmp.eq.s32.totalorder %v141, %v149
        %vm151 = vmor %vm145, %vm150
        %v152 = vadd.s32 %v139, 45
        %153 = vset.pattern.permute.xlu0 2
        %154 = vperm.xlu0 %153, %v152
        %v155 = vpop.permute.xlu0 %154
        %vm156 = vcmp.eq.s32.totalorder %v141, %v155
        %vm157 = vmor %vm151, %vm156
        %v158 = vadd.s32 %v139, 53
        %159 = vset.pattern.permute.xlu0 3
        %160 = vperm.xlu0 %159, %v158
        %v161 = vpop.permute.xlu0 %160
        %vm162 = vcmp.eq.s32.totalorder %v141, %v161
        %vm163 = vmor %vm157, %vm162
        %v164 = vadd.s32 %v139, 78
        %165 = vset.pattern.permute.xlu0 4
        %166 = vperm.xlu0 %165, %v164
        %v167 = vpop.permute.xlu0 %166
        %vm168 = vcmp.eq.s32.totalorder %v141, %v167
        %vm169 = vmor %vm163, %vm168
        %v170 = vsel %vm169, 1, 0
        %v171 = vcvt.s32.f32 %v170
        %v172 = vld [vmem:[%s1] sm:$0xff]
        %v173 = vld [vmem:[%s1 + $0x8] sm:$0xff]
        %v174 = vld [vmem:[%s1 + $0x10] sm:$0xff]
        %v175 = vld [vmem:[%s1 + $0x18] sm:$0xff]
        %v176 = vld [vmem:[%s1 + $0x20] sm:$0xff]
        %v177 = vld [vmem:[%s1 + $0x28] sm:$0xff]
        %v178 = vld [vmem:[%s1 + $0x30] sm:$0xff]
        %v179 = vld [vmem:[%s1 + $0x38] sm:$0xff]
        %v180 = vld [vmem:[%s1 + $0x40] sm:$0xff]
        %v181 = vld [vmem:[%s1 + $0x48] sm:$0xff]
        %v182 = vld [vmem:[%s1 + $0x50] sm:$0xff]
        %v183 = vld [vmem:[%s1 + $0x58] sm:$0xff]
        %v184 = vld [vmem:[%s1 + $0x60] sm:$0xff]
        %v185 = vld [vmem:[%s1 + $0x68] sm:$0xff]
        %v186 = vld [vmem:[%s1 + $0x70] sm:$0xff]
        %v187 = vld [vmem:[%s1 + $0x78] sm:$0xff]
        %188 = vmatpush.msra.mxu0 %v187
        %189 = vmatpush.msra.mxu0 %v186
        %190 = vmatpush.msra.mxu0 %v185
        %191 = vmatpush.msra.mxu0 %v184
        %192 = vmatpush.msra.mxu0 %v183
        %193 = vmatpush.msra.mxu0 %v182
        %194 = vmatpush.msra.mxu0 %v181
        %195 = vmatpush.msra.mxu0 %v180
        %196 = vmatpush.msra.mxu0 %v179
        %197 = vmatpush.msra.mxu0 %v178
        %198 = vmatpush.msra.mxu0 %v177
        %199 = vmatpush.msra.mxu0 %v176
        %200 = vmatpush.msra.mxu0 %v175
        %201 = vmatpush.msra.mxu0 %v174
        %202 = vmatpush.msra.mxu0 %v173
        %203 = vmatpush.msra.mxu0 %v172
        %204 = vmatmul.f32.gmra.mxu0 %v171
        %v205 = vpop.f32.mrf.mxu0
        %v206 = vadd.f32 0.0, %v205
        %207 = vdwg.mxu0
        %vm208 = vcmask 261120
        %209 = vst.msk [vmem:[%s134] sm:$0xff] %vm208, %v206
        %s210 = sand.u32 %s71, 1
        %s211 = scalar_lea.sflag [#allocation3], %s210
        %s212 = sand.u32 %s71, 1
        %s213 = smul.addr %s212, 8
        %s214 = scalar_lea.vmem [#allocation2], %s213
        // Predicated region
        $region29: #{tpu_custom_call.1} parent=27 // pred_check
          %p215 = pneg %p81
        $region30: #{tpu_custom_call.1} parent=27 // pred_check_branch
          %217 = sbr.rel (%p215) target = $region32
        $region31: #{tpu_custom_call.1} parent=27 // pred_region
          %219 = vsyncadd %s211, 0
          %s220 = smul.addr %s16, 8
          %s221 = scalar_lea.hbm %s2, %s220
          %s223 = sshll.u32 %s214, 4
          %s224 = int_to_ptr.vmem [resolvable:$true] %s223
          %s225 = sshll.u32 %s221, 4
          %s226 = int_to_ptr.hbm [resolvable:$true] %s225
          %228 = dma.vmem_to_hbm [thread:$0]  %s224, 128, %s226, %s211
        $region32: #{tpu_custom_call.1} parent=27 // pred_fallthru
          _
      $region28: #{tpu_custom_call.1} parent=5 // pred_fallthru
        _
      %p229 = scmp.le.s32.totalorder 2, %s11
      // Predicated region
      $region33: #{tpu_custom_call.1} parent=5 // pred_check
        %p230 = pneg %p229
      $region34: #{tpu_custom_call.1} parent=5 // pred_check_branch
        %232 = sbr.rel (%p230) target = $region36
      $region35: #{tpu_custom_call.1} parent=5 // pred_region
        %s233 = ssub.s32 %s11, 2
        // Predicated region
        $region37: #{tpu_custom_call.1} parent=35 // pred_check
          %p234 = pneg %p87
        $region38: #{tpu_custom_call.1} parent=35 // pred_check_branch
          %236 = sbr.rel (%p234) target = $region40
        $region39: #{tpu_custom_call.1} parent=35 // pred_region
          %s237 = sand.u32 %s72, 1
          %s238 = scalar_lea.sflag [#allocation3], %s237
          %s239 = sand.u32 %s72, 1
          %s240 = smul.addr %s239, 8
          %s241 = scalar_lea.vmem [#allocation2], %s240
          %243 = dma.done %s238, 128
        $region40: #{tpu_custom_call.1} parent=35 // pred_fallthru
          _
      $region36: #{tpu_custom_call.1} parent=5 // pred_fallthru
        _
    $region6: #{tpu_custom_call.1} parent=1 // loop_footer
      %s15 = sadd.s32 1, %s11
    $region7: #{tpu_custom_call.1} parent=1 // loop_footer_branch
      %10 = sbr.rel target = $region3
    $region8: #{tpu_custom_call.1} parent=1 // loop_exit
      _
    %244 = vsyncpa [#allocation3], 1
    %s245 = scalar_lea.sflag [#allocation3], 1
    %246 = vsyncpa %s245, 1

</llo_original>
